<compile_context>
chip_gen: v6e
topology: v6e:2x2x1
jax: 0.10.0
libtpu: 0.0.40
codegen_flags: <defaults>
</compile_context>

<pallas_src>
import jax
import jax.numpy as jnp
from jax import lax
from jax.experimental import pallas as pl
from jax.experimental.pallas import tpu as pltpu


def _round_up(x, m):
    return ((x + m - 1) // m) * m


# ---------------------------------------------------------------------------
# Pallas kernel: fused   out = (u @ items.T) * (1 - mask) - 1e8 * mask
# ---------------------------------------------------------------------------
def _masked_predict_kernel(u_ref, it_ref, mask_ref, out_ref):
    # u_ref:    (TB, D)   tile of batch-user embeddings
    # it_ref:   (TN, D)   tile of item embeddings (contracted on last dim:
    #                     no in-kernel transpose / relayout)
    # mask_ref: (TB, TN)  train-mask tile (0/1, f32 as supplied by the caller)
    # out_ref:  (TB, TN)  f32 masked prediction tile
    scores = lax.dot_general(
        u_ref[...], it_ref[...],
        dimension_numbers=(((1,), (1,)), ((), ())),   # contract last dims
        preferred_element_type=jnp.float32,
        precision=lax.Precision.HIGHEST)
    m = mask_ref[...].astype(jnp.float32)
    # Exact BaseModel._mask_predict semantics (also correct for soft masks).
    out_ref[...] = scores * (1.0 - m) - 1.0e8 * m


def _default_tiles():
    """Per-generation tile defaults sized for the default scoped-VMEM budget."""
    try:
        kind = jax.devices()[0].device_kind.lower()
    except Exception:  # pragma: no cover - defensive
        kind = ""
    if ("v6" in kind) or ("v7" in kind):
        # out 4 MiB + mask 4 MiB per tile, x2 buffers + small embed tiles
        # ≈ 17-20 MiB  <  32 MiB default scoped VMEM (v6e & v7x).
        return 512, 2048
    # v5e (16 MiB default scoped VMEM) and anything unrecognised:
    # ≈ 9-10 MiB double-buffered.
    return 256, 2048


def full_predict_pallas(batch_user_embeds, item_embeds, train_mask,
                        *, tb=None, tn=None, compute_dtype=None):
    """All-rank masked predictions.

    batch_user_embeds: [B, D]  float32
    item_embeds:       [N, D]  float32
    train_mask:        [B, N]  0/1 mask (float32 expected; any float works)
    returns:           [B, N]  float32
    """
    B, D = batch_user_embeds.shape
    N, D2 = item_embeds.shape
    assert D == D2
    assert train_mask.shape == (B, N)

    dtb, dtn = _default_tiles()
    tb = dtb if tb is None else tb
    tn = dtn if tn is None else tn

    # Clamp to an (8,128)-aligned problem size; Pallas handles ragged last
    # blocks, so the big B x N mask / output are never padded or sliced.
    tb = min(tb, _round_up(B, 8))
    tn = min(tn, _round_up(N, 128))

    # Keep at least 2 tiles along a "parallel" grid axis when possible so
    # both v7x TensorCores are used (megacore sharding).
    if pl.cdiv(B, tb) == 1 and pl.cdiv(N, tn) == 1 and N > 128:
        tn = _round_up(pl.cdiv(N, 2), 128)

    grid = (pl.cdiv(B, tb), pl.cdiv(N, tn))   # items innermost: user tile reused

    # With small emb_dim the op is deeply HBM-bound on mask/output, so f32
    # operands cost nothing; only downcast for large D where re-streaming the
    # item table starts to matter.
    if compute_dtype is None:
        compute_dtype = jnp.float32 if D <= 64 else jnp.bfloat16
    u = batch_user_embeds.astype(compute_dtype)
    it = item_embeds.astype(compute_dtype)

    flops = 2 * B * N * D
    bytes_accessed = (u.size * u.dtype.itemsize
                      + grid[0] * it.size * it.dtype.itemsize   # item re-stream
                      + train_mask.size * train_mask.dtype.itemsize
                      + B * N * 4)

    return pl.pallas_call(
        _masked_predict_kernel,
        out_shape=jax.ShapeDtypeStruct((B, N), jnp.float32),
        grid_spec=pltpu.PrefetchScalarGridSpec(
            num_scalar_prefetch=0,
            grid=grid,
            in_specs=[
                pl.BlockSpec((tb, D), lambda i, j: (i, 0)),    # users
                pl.BlockSpec((tn, D), lambda i, j: (j, 0)),    # items
                pl.BlockSpec((tb, tn), lambda i, j: (i, j)),   # mask (f32)
            ],
            out_specs=pl.BlockSpec((tb, tn), lambda i, j: (i, j)),
        ),
        compiler_params=pltpu.CompilerParams(
            dimension_semantics=("parallel", "parallel")),
        cost_estimate=pl.CostEstimate(
            flops=int(flops), transcendentals=0,
            bytes_accessed=int(bytes_accessed)),
    )(u, it, train_mask)


# ---------------------------------------------------------------------------
# BaseModel equivalent.  forward() is abstract in PyTorch; synthetic embedding
# tables are built here so full_predict has concrete embeddings to work with.
# ---------------------------------------------------------------------------
class BaseModelPallas:
    def __init__(self, user_num, item_num, emb_dim, key):
        self.user_num = user_num
        self.item_num = item_num
        ku, ki = jax.random.split(key)
        self.user_embeds = jax.random.normal(
            ku, (user_num, emb_dim), dtype=jnp.float32) * 0.1
        self.item_embeds = jax.random.normal(
            ki, (item_num, emb_dim), dtype=jnp.float32) * 0.1

    def forward(self):
        # TODO(synk): forward() is abstract in the PyTorch BaseModel; concrete
        # subclasses (GNN propagation etc.) would compute these embeddings.
        return self.user_embeds, self.item_embeds

    def full_predict(self, batch_data):
        batch_users, train_mask = batch_data
        user_embeds, item_embeds = self.forward()
        # gather is glue in plain JAX; matmul + masking is fused in the kernel
        batch_user_embeds = user_embeds[batch_users]
        return full_predict_pallas(batch_user_embeds, item_embeds, train_mask)

    def _mask_predict(self, full_preds, train_mask):
        # reference semantics (kept for parity with the PyTorch API)
        return full_preds * (1 - train_mask) - 1.0e8 * train_mask


# ---------------------------------------------------------------------------
if __name__ == "__main__":
    key = jax.random.PRNGKey(0)
    k_model, k_users, k_mask = jax.random.split(key, 3)

    user_num, item_num, emb_dim = 64, 256, 32
    batch = 8

    model = BaseModelPallas(user_num, item_num, emb_dim, k_model)

    batch_users = jax.random.randint(k_users, (batch,), 0, user_num)
    train_mask = (jax.random.uniform(k_mask, (batch, item_num)) < 0.1
                  ).astype(jnp.float32)

    preds = model.full_predict((batch_users, train_mask))
    preds = jax.block_until_ready(preds)

    # correctness check against the plain-JAX reference
    ue, ie = model.forward()
    ref = ue[batch_users] @ ie.T
    ref = ref * (1 - train_mask) - 1.0e8 * train_mask
    assert preds.shape == (batch, item_num)
    assert jnp.allclose(preds, ref, atol=1e-3, rtol=1e-3)
    # masked positions must be exactly -1e8
    assert jnp.all(jnp.where(train_mask > 0, preds == -1.0e8, True))

    print("KERNEL_OK")
</pallas_src>

<mosaic_0001>
module attributes {stable_mosaic.version = 11 : i64} {
  func.func @_masked_predict_kernel(%arg0: i32, %arg1: i32, %arg2: memref<8x32xf32, #tpu.memory_space<vmem>>, %arg3: memref<128x32xf32, #tpu.memory_space<vmem>>, %arg4: memref<8x128xf32, #tpu.memory_space<vmem>>, %arg5: memref<8x128xf32, #tpu.memory_space<vmem>>) attributes {dimension_semantics = [#tpu.dimension_semantics<parallel>, #tpu.dimension_semantics<parallel>], iteration_bounds = array<i64: 1, 2>, scalar_prefetch = 0 : i64, scratch_operands = 0 : i64, tpu.core_type = #tpu.core_type<tc>, window_params = [{transform_indices = @transform_0, window_bounds = array<i64: 8, 32>}, {transform_indices = @transform_1, window_bounds = array<i64: 128, 32>}, {transform_indices = @transform_2, window_bounds = array<i64: 8, 128>}, {transform_indices = @transform_3, window_bounds = array<i64: 8, 128>}]} {
    %c0 = arith.constant 0 : index
    %c0_0 = arith.constant 0 : index
    %0 = vector.load %arg2[%c0, %c0_0] : memref<8x32xf32, #tpu.memory_space<vmem>>, vector<8x32xf32>
    %c0_1 = arith.constant 0 : index
    %c0_2 = arith.constant 0 : index
    %1 = vector.load %arg3[%c0_1, %c0_2] : memref<128x32xf32, #tpu.memory_space<vmem>>, vector<128x32xf32>
    %cst = arith.constant dense<0.000000e+00> : vector<8x128xf32>
    %2 = tpu.matmul %0, %1, %cst {dimension_numbers = #tpu.dot_dimension_numbers<[1], [1], [0], [0], [0, 0, 1, 0], [], []>, precision = #tpu.contract_precision<fp32>} : vector<8x32xf32>, vector<128x32xf32>, vector<8x128xf32> -> vector<8x128xf32>
    %c0_3 = arith.constant 0 : index
    %c0_4 = arith.constant 0 : index
    %3 = vector.load %arg4[%c0_3, %c0_4] : memref<8x128xf32, #tpu.memory_space<vmem>>, vector<8x128xf32>
    %cst_5 = arith.constant 1.000000e+00 : f32
    %4 = vector.broadcast %cst_5 : f32 to vector<8x128xf32>
    %5 = arith.subf %4, %3 : vector<8x128xf32>
    %6 = arith.mulf %2, %5 : vector<8x128xf32>
    %cst_6 = arith.constant 1.000000e+08 : f32
    %7 = vector.broadcast %cst_6 : f32 to vector<8x128xf32>
    %8 = arith.mulf %7, %3 : vector<8x128xf32>
    %9 = arith.subf %6, %8 : vector<8x128xf32>
    %c0_7 = arith.constant 0 : index
    %c0_8 = arith.constant 0 : index
    %10 = vector.load %arg5[%c0_7, %c0_8] : memref<8x128xf32, #tpu.memory_space<vmem>>, vector<8x128xf32>
    tpu.vector_store %arg5[%c0_7, %c0_8], %9 {strides = array<i32>} : memref<8x128xf32, #tpu.memory_space<vmem>>, vector<8x128xf32>,
    return
  }
  func.func @transform_0(%arg0: i32, %arg1: i32) -> (i32, i32) {
    %c0_i32 = arith.constant 0 : i32
    %c0_i32_0 = arith.constant 0 : i32
    return %arg0, %c0_i32 : i32, i32
  }
  func.func @transform_1(%arg0: i32, %arg1: i32) -> (i32, i32) {
    %c0_i32 = arith.constant 0 : i32
    %c0_i32_0 = arith.constant 0 : i32
    return %arg1, %c0_i32 : i32, i32
  }
  func.func @transform_2(%arg0: i32, %arg1: i32) -> (i32, i32) {
    %c0_i32 = arith.constant 0 : i32
    return %arg0, %arg1 : i32, i32
  }
  func.func @transform_3(%arg0: i32, %arg1: i32) -> (i32, i32) {
    %c0_i32 = arith.constant 0 : i32
    return %arg0, %arg1 : i32, i32
  }
}

</mosaic_0001>

<llo_original>
// kernel: tpu_custom_call.1
$region0: #{tpu_custom_call.1}
  #allocation0 [shape = 'u32[]', space=smem, size = 0x4, offset = 0x4, fixed_abs, tag = 'smem constant byte address 0x4 - core index']
  #allocation1 [shape = 'u32[144,128]{1,0:T(1,128)}', space=vmem, size = 0x12000, scoped, tag = 'internal scratch']
  %s0 = inlined_call_operand.vmem [shape: f32[8,32], index: 0, kind: input, shape index: {}]
  %s1 = inlined_call_operand.vmem [shape: f32[256,32], index: 1, kind: input, shape index: {}]
  %s2 = inlined_call_operand.vmem [shape: f32[8,256], index: 2, kind: input, shape index: {}]
  %s3 = inlined_call_operand.hbm [shape: f32[8,256], index: 3, kind: output, shape index: {}]
  %s4 = sld [smem:[#allocation0]]
  $region45: #{tpu_custom_call.1} parent=0
    _
  %s6 = ssub.s32 1, %s4
  %s7 = scalar_select 0, %s6, %s4
  $region1: #{tpu_custom_call.1} parent=0
    #allocation2 [shape = 'u8[8192]{0}', space=vmem, size = 0x2000, scoped, tag = 'output window, operand 0']
    #allocation3 [shape = 's32[2]{0}', space=sflag, size = 0x8, scoped, tag = 'scoped memory for tpu_custom_call.1']
    %8 = vsyncpa [#allocation3], 0
    %s9 = scalar_lea.sflag [#allocation3], 1
    %10 = vsyncpa %s9, 0
    loop: start=0, step=1, limit=4
    $region2: #{tpu_custom_call.1} parent=1 // loop_pre_header
      _
    $region3: #{tpu_custom_call.1} parent=1 // loop_header
      %s12 = sphi 0, %s16
      %p13 = scmp.ge.s32.totalorder %s12, 4
      %s19 = sphi 0, %s31
      %s20 = sphi 0, %s27
      %s21 = sphi 0, %s19
      %s22 = sphi 0, %s20
      %s23 = sphi 0, %s21
      %s24 = sphi 0, %s22
      %s34 = sphi 0, %s36
      %s37 = sphi 0, %s34
      %s38 = sphi 0, %s37
      %s54 = sphi 0, %s38
      %s60 = sphi 0, %s62
      %s63 = sphi 0, %s60
      %s64 = sphi 0, %s63
      %s80 = sphi 0, %s64
      %s88 = sphi 0, %s90
      %s91 = sphi 0, %s88
      %s92 = sphi 0, %s91
      %s108 = sphi 0, %s92
      %s116 = sphi 0, %s118
      %s119 = sphi 0, %s116
      %s120 = sphi 0, %s119
      %s136 = sphi 0, %s120
    $region4: #{tpu_custom_call.1} parent=1 // loop_header_branch
      %15 = sbr.rel (%p13) target = $region8
    $region5: #{tpu_custom_call.1} parent=1 // loop_body
      %s17 = ssub.s32 %s12, 1
      %s18 = ssub.s32 %s12, 2
      %s25 = sadd.s32 1, %s20
      %p26 = scmp.ge.s32.totalorder %s25, 2
      %s27 = scalar_select %p26, 0, %s25
      %s28 = sadd.s32 1, %s19
      %s29 = scalar_select %p26, %s28, %s19
      %p30 = scmp.ge.s32.totalorder %s29, 1
      %s31 = scalar_select %p30, 0, %s29
      %s32 = ssub.s32 %s19, %s31
      %p33 = scmp.eq.s32.totalorder %s32, 0
      %s35 = sadd.s32 %s34, 1
      %s36 = scalar_select %p33, %s34, %s35
      %p39 = pneg %p33
      %p40 = scmp.eq.s32.totalorder %s12, 1
      %p41 = por %p39, %p40
      %p42 = scmp.ne.s32.totalorder %s34, %s37
      %p43 = scmp.eq.s32.totalorder %s12, 0
      %p44 = por %p42, %p43
      %p45 = scmp.ne.s32.totalorder %s34, %s37
      %p46 = scmp.eq.s32.totalorder %s17, 1
      %p47 = por %p45, %p46
      %p48 = scmp.ne.s32.totalorder %s37, %s38
      %p49 = scmp.eq.s32.totalorder %s17, 0
      %p50 = por %p48, %p49
      %p51 = scmp.ne.s32.totalorder %s37, %s38
      %p52 = scmp.eq.s32.totalorder %s18, 1
      %p53 = por %p51, %p52
      %p55 = scmp.ne.s32.totalorder %s38, %s54
      %p56 = scmp.eq.s32.totalorder %s18, 0
      %p57 = por %p55, %p56
      %s58 = ssub.s32 %s20, %s27
      %p59 = scmp.eq.s32.totalorder %s58, 0
      %s61 = sadd.s32 %s60, 1
      %s62 = scalar_select %p59, %s60, %s61
      %p65 = pneg %p59
      %p66 = scmp.eq.s32.totalorder %s12, 1
      %p67 = por %p65, %p66
      %p68 = scmp.ne.s32.totalorder %s60, %s63
      %p69 = scmp.eq.s32.totalorder %s12, 0
      %p70 = por %p68, %p69
      %p71 = scmp.ne.s32.totalorder %s60, %s63
      %p72 = scmp.eq.s32.totalorder %s17, 1
      %p73 = por %p71, %p72
      %p74 = scmp.ne.s32.totalorder %s63, %s64
      %p75 = scmp.eq.s32.totalorder %s17, 0
      %p76 = por %p74, %p75
      %p77 = scmp.ne.s32.totalorder %s63, %s64
      %p78 = scmp.eq.s32.totalorder %s18, 1
      %p79 = por %p77, %p78
      %p81 = scmp.ne.s32.totalorder %s64, %s80
      %p82 = scmp.eq.s32.totalorder %s18, 0
      %p83 = por %p81, %p82
      %s84 = ssub.s32 %s19, %s31
      %s85 = ssub.s32 %s20, %s27
      %s86 = sor.u32 %s84, %s85
      %p87 = scmp.eq.s32.totalorder %s86, 0
      %s89 = sadd.s32 %s88, 1
      %s90 = scalar_select %p87, %s88, %s89
      %p93 = pneg %p87
      %p94 = scmp.eq.s32.totalorder %s12, 1
      %p95 = por %p93, %p94
      %p96 = scmp.ne.s32.totalorder %s88, %s91
      %p97 = scmp.eq.s32.totalorder %s12, 0
      %p98 = por %p96, %p97
      %p99 = scmp.ne.s32.totalorder %s88, %s91
      %p100 = scmp.eq.s32.totalorder %s17, 1
      %p101 = por %p99, %p100
      %p102 = scmp.ne.s32.totalorder %s91, %s92
      %p103 = scmp.eq.s32.totalorder %s17, 0
      %p104 = por %p102, %p103
      %p105 = scmp.ne.s32.totalorder %s91, %s92
      %p106 = scmp.eq.s32.totalorder %s18, 1
      %p107 = por %p105, %p106
      %p109 = scmp.ne.s32.totalorder %s92, %s108
      %p110 = scmp.eq.s32.totalorder %s18, 0
      %p111 = por %p109, %p110
      %s112 = ssub.s32 %s19, %s31
      %s113 = ssub.s32 %s20, %s27
      %s114 = sor.u32 %s112, %s113
      %p115 = scmp.eq.s32.totalorder %s114, 0
      %s117 = sadd.s32 %s116, 1
      %s118 = scalar_select %p115, %s116, %s117
      %p121 = pneg %p115
      %p122 = scmp.eq.s32.totalorder %s12, 1
      %p123 = por %p121, %p122
      %p124 = scmp.ne.s32.totalorder %s116, %s119
      %p125 = scmp.eq.s32.totalorder %s12, 0
      %p126 = por %p124, %p125
      %p127 = scmp.ne.s32.totalorder %s116, %s119
      %p128 = scmp.eq.s32.totalorder %s17, 1
      %p129 = por %p127, %p128
      %p130 = scmp.ne.s32.totalorder %s119, %s120
      %p131 = scmp.eq.s32.totalorder %s17, 0
      %p132 = por %p130, %p131
      %p133 = scmp.ne.s32.totalorder %s119, %s120
      %p134 = scmp.eq.s32.totalorder %s18, 1
      %p135 = por %p133, %p134
      %p137 = scmp.ne.s32.totalorder %s120, %s136
      %p138 = scmp.eq.s32.totalorder %s18, 0
      %p139 = por %p137, %p138
      %p140 = scmp.le.s32.totalorder 1, %s12
      %p141 = scmp.lt.s32.totalorder %s12, 3
      %p142 = pnand %p140, %p141
      %p143 = pneg %p142
      // Predicated region
      $region9: #{tpu_custom_call.1} parent=5 // pred_check
        _
      $region10: #{tpu_custom_call.1} parent=5 // pred_check_branch
        %145 = sbr.rel (%p142) target = $region12
      $region11: #{tpu_custom_call.1} parent=5 // pred_region
        %s146 = ssub.s32 %s12, 1
        // Predicated region
        $region13: #{tpu_custom_call.1} parent=11 // pred_check
          %p147 = pneg %p50
        $region14: #{tpu_custom_call.1} parent=11 // pred_check_branch
          %149 = sbr.rel (%p147) target = $region16
        $region15: #{tpu_custom_call.1} parent=11 // pred_region
          %p150 = scmp.lt.s32.totalorder %s21, 0
          %s151 = scalar_select %p150, %s21, 0
          %s152 = smul.addr %s151, 8
          %s153 = scalar_lea.vmem %s0, %s152
        $region16: #{tpu_custom_call.1} parent=11 // pred_fallthru
          _
      $region12: #{tpu_custom_call.1} parent=5 // pred_fallthru
        _
      %p154 = scmp.lt.s32.totalorder %s12, 2
      // Predicated region
      $region17: #{tpu_custom_call.1} parent=5 // pred_check
        %p155 = pneg %p154
      $region18: #{tpu_custom_call.1} parent=5 // pred_check_branch
        %157 = sbr.rel (%p155) target = $region20
      $region19: #{tpu_custom_call.1} parent=5 // pred_region
        // Predicated region
        $region21: #{tpu_custom_call.1} parent=19 // pred_check
          %p158 = pneg %p70
        $region22: #{tpu_custom_call.1} parent=19 // pred_check_branch
          %160 = sbr.rel (%p158) target = $region24
        $region23: #{tpu_custom_call.1} parent=19 // pred_region
          %s161 = smul.u32 16, %s20
          %p162 = scmp.lt.s32.totalorder %s161, 31
          %s163 = scalar_select %p162, %s161, 31
          %s164 = smul.addr %s163, 8
          %s165 = scalar_lea.vmem %s1, %s164
          %s166 = smul.u32 16, %s20
        $region24: #{tpu_custom_call.1} parent=19 // pred_fallthru
          _
        // Predicated region
        $region25: #{tpu_custom_call.1} parent=19 // pred_check
          %p167 = pneg %p98
        $region26: #{tpu_custom_call.1} parent=19 // pred_check_branch
          %169 = sbr.rel (%p167) target = $region28
        $region27: #{tpu_custom_call.1} parent=19 // pred_region
          %p170 = scmp.lt.s32.totalorder %s19, 0
          %s171 = scalar_select %p170, %s19, 0
          %p172 = scmp.lt.s32.totalorder %s20, 1
          %s173 = scalar_select %p172, %s20, 1
          %s174 = smul.addr %s171, 2
          %s175 = sadd.s32 %s173, %s174
          %s176 = smul.addr %s175, 8
          %s177 = scalar_lea.vmem %s2, %s176
        $region28: #{tpu_custom_call.1} parent=19 // pred_fallthru
          _
      $region20: #{tpu_custom_call.1} parent=5 // pred_fallthru
        _
      %p178 = scmp.le.s32.totalorder 1, %s12
      %p179 = scmp.lt.s32.totalorder %s12, 3
      %p180 = pnand %p178, %p179
      %p181 = pneg %p180
      // Predicated region
      $region29: #{tpu_custom_call.1} parent=5 // pred_check
        _
      $region30: #{tpu_custom_call.1} parent=5 // pred_check_branch
        %183 = sbr.rel (%p180) target = $region32
      $region31: #{tpu_custom_call.1} parent=5 // pred_region
        %s184 = ssub.s32 %s12, 1
        %p185 = scmp.lt.s32.totalorder %s21, 0
        %s186 = scalar_select %p185, %s21, 0
        %s187 = smul.addr %s186, 8
        %s188 = scalar_lea.vmem %s0, %s187
        %p189 = pneg %p50
        %p190 = pneg %p47
        %s191 = smul.u32 16, %s22
        %p192 = scmp.lt.s32.totalorder %s191, 31
        %s193 = scalar_select %p192, %s191, 31
        %s194 = smul.addr %s193, 8
        %s195 = scalar_lea.vmem %s1, %s194
        %p196 = pneg %p76
        %p197 = pneg %p73
        %p198 = scmp.lt.s32.totalorder %s21, 0
        %s199 = scalar_select %p198, %s21, 0
        %p200 = scmp.lt.s32.totalorder %s22, 1
        %s201 = scalar_select %p200, %s22, 1
        %s202 = smul.addr %s199, 2
        %s203 = sadd.s32 %s201, %s202
        %s204 = smul.addr %s203, 8
        %s205 = scalar_lea.vmem %s2, %s204
        %p206 = pneg %p104
        %p207 = pneg %p101
        %p208 = pneg %p132
        %p209 = pneg %p129
        %s210 = sand.u32 %s119, 1
        %s211 = scalar_lea.sflag [#allocation3], %s210
        %s212 = sand.u32 %s119, 1
        %s213 = smul.addr %s212, 8
        %s214 = scalar_lea.vmem [#allocation2], %s213
        %p215 = scmp.lt.s32.totalorder %s21, 0
        %s216 = scalar_select %p215, %s21, 0
        %s217 = smul.addr %s216, 8
        %s218 = scalar_lea.vmem %s0, %s217
        %s219 = smul.u32 16, %s22
        %p220 = scmp.lt.s32.totalorder %s219, 31
        %s221 = scalar_select %p220, %s219, 31
        %s222 = smul.addr %s221, 8
        %s223 = scalar_lea.vmem %s1, %s222
        %s224 = smul.u32 16, %s22
        %p225 = scmp.lt.s32.totalorder %s21, 0
        %s226 = scalar_select %p225, %s21, 0
        %p227 = scmp.lt.s32.totalorder %s22, 1
        %s228 = scalar_select %p227, %s22, 1
        %s229 = smul.addr %s226, 2
        %s230 = sadd.s32 %s228, %s229
        %s231 = smul.addr %s230, 8
        %s232 = scalar_lea.vmem %s2, %s231
        %v233 = vld [vmem:[%s218] sm:$0xff]
        %v234 = vld [vmem:[%s223] sm:$0xff]
        %v235 = vld [vmem:[%s223 + $0x8] sm:$0xff]
        %v236 = vld [vmem:[%s223 + $0x10] sm:$0xff]
        %v237 = vld [vmem:[%s223 + $0x18] sm:$0xff]
        %v238 = vld [vmem:[%s223 + $0x20] sm:$0xff]
        %v239 = vld [vmem:[%s223 + $0x28] sm:$0xff]
        %v240 = vld [vmem:[%s223 + $0x30] sm:$0xff]
        %v241 = vld [vmem:[%s223 + $0x38] sm:$0xff]
        %v242 = vld [vmem:[%s223 + $0x40] sm:$0xff]
        %v243 = vld [vmem:[%s223 + $0x48] sm:$0xff]
        %v244 = vld [vmem:[%s223 + $0x50] sm:$0xff]
        %v245 = vld [vmem:[%s223 + $0x58] sm:$0xff]
        %v246 = vld [vmem:[%s223 + $0x60] sm:$0xff]
        %v247 = vld [vmem:[%s223 + $0x68] sm:$0xff]
        %v248 = vld [vmem:[%s223 + $0x70] sm:$0xff]
        %v249 = vld [vmem:[%s223 + $0x78] sm:$0xff]
        %vm250 = vcmask 261120
        %v252 = vsel %vm250, %v233, 0
        %v255 = vsel %vm250, %v234, 0
        %v258 = vsel %vm250, %v235, 0
        %v261 = vsel %vm250, %v236, 0
        %v264 = vsel %vm250, %v237, 0
        %v267 = vsel %vm250, %v238, 0
        %v270 = vsel %vm250, %v239, 0
        %v273 = vsel %vm250, %v240, 0
        %v276 = vsel %vm250, %v241, 0
        %v279 = vsel %vm250, %v242, 0
        %v282 = vsel %vm250, %v243, 0
        %v285 = vsel %vm250, %v244, 0
        %v288 = vsel %vm250, %v245, 0
        %v291 = vsel %vm250, %v246, 0
        %v294 = vsel %vm250, %v247, 0
        %v297 = vsel %vm250, %v248, 0
        %v300 = vsel %vm250, %v249, 0
        %302 = vmatprep.subr.mxu0 0.0
        %v303 = vand.u32 %v300, 4294901760
        %304 = vmatpush1.xpose.msra.mxu0 %v303
        %305 = vmatprep.subr.mxu0 0.0
        %v306 = vand.u32 %v297, 4294901760
        %307 = vmatpush1.xpose.msra.mxu0 %v306
        %308 = vmatprep.subr.mxu0 0.0
        %v309 = vand.u32 %v294, 4294901760
        %310 = vmatpush1.xpose.msra.mxu0 %v309
        %311 = vmatprep.subr.mxu0 0.0
        %v312 = vand.u32 %v291, 4294901760
        %313 = vmatpush1.xpose.msra.mxu0 %v312
        %314 = vmatprep.subr.mxu0 0.0
        %v315 = vand.u32 %v288, 4294901760
        %316 = vmatpush1.xpose.msra.mxu0 %v315
        %317 = vmatprep.subr.mxu0 0.0
        %v318 = vand.u32 %v285, 4294901760
        %319 = vmatpush1.xpose.msra.mxu0 %v318
        %320 = vmatprep.subr.mxu0 0.0
        %v321 = vand.u32 %v282, 4294901760
        %322 = vmatpush1.xpose.msra.mxu0 %v321
        %323 = vmatprep.subr.mxu0 0.0
        %v324 = vand.u32 %v279, 4294901760
        %325 = vmatpush1.xpose.msra.mxu0 %v324
        %326 = vmatprep.subr.mxu0 0.0
        %v327 = vand.u32 %v276, 4294901760
        %328 = vmatpush1.xpose.msra.mxu0 %v327
        %329 = vmatprep.subr.mxu0 0.0
        %v330 = vand.u32 %v273, 4294901760
        %331 = vmatpush1.xpose.msra.mxu0 %v330
        %332 = vmatprep.subr.mxu0 0.0
        %v333 = vand.u32 %v270, 4294901760
        %334 = vmatpush1.xpose.msra.mxu0 %v333
        %335 = vmatprep.subr.mxu0 0.0
        %v336 = vand.u32 %v267, 4294901760
        %337 = vmatpush1.xpose.msra.mxu0 %v336
        %338 = vmatprep.subr.mxu0 0.0
        %v339 = vand.u32 %v264, 4294901760
        %340 = vmatpush1.xpose.msra.mxu0 %v339
        %341 = vmatprep.subr.mxu0 0.0
        %v342 = vand.u32 %v261, 4294901760
        %343 = vmatpush1.xpose.msra.mxu0 %v342
        %344 = vmatprep.subr.mxu0 0.0
        %v345 = vand.u32 %v258, 4294901760
        %346 = vmatpush1.xpose.msra.mxu0 %v345
        %347 = vmatprep.subr.mxu0 0.0
        %v348 = vand.u32 %v255, 4294901760
        %349 = vmatpush1.xpose.msra.mxu0 %v348
        %350 = vmatprep.subr.mxu0 0.0
        %351 = vmatpush2.xpose.msra.mxu0 0.0
        %352 = vmatprep.subr.mxu0 0.0
        %353 = vmatpush2.xpose.msra.mxu0 0.0
        %354 = vmatprep.subr.mxu0 0.0
        %355 = vmatpush2.xpose.msra.mxu0 0.0
        %356 = vmatprep.subr.mxu0 0.0
        %357 = vmatpush2.xpose.msra.mxu0 0.0
        %358 = vmatprep.subr.mxu0 0.0
        %359 = vmatpush2.xpose.msra.mxu0 0.0
        %360 = vmatprep.subr.mxu0 0.0
        %361 = vmatpush2.xpose.msra.mxu0 0.0
        %362 = vmatprep.subr.mxu0 0.0
        %363 = vmatpush2.xpose.msra.mxu0 0.0
        %364 = vmatprep.subr.mxu0 0.0
        %365 = vmatpush2.xpose.msra.mxu0 0.0
        %366 = vmatprep.subr.mxu0 0.0
        %367 = vmatpush2.xpose.msra.mxu0 0.0
        %368 = vmatprep.subr.mxu0 0.0
        %369 = vmatpush2.xpose.msra.mxu0 0.0
        %370 = vmatprep.subr.mxu0 0.0
        %371 = vmatpush2.xpose.msra.mxu0 0.0
        %372 = vmatprep.subr.mxu0 0.0
        %373 = vmatpush2.xpose.msra.mxu0 0.0
        %374 = vmatprep.subr.mxu0 0.0
        %375 = vmatpush2.xpose.msra.mxu0 0.0
        %376 = vmatprep.subr.mxu0 0.0
        %377 = vmatpush2.xpose.msra.mxu0 0.0
        %378 = vmatprep.subr.mxu0 0.0
        %379 = vmatpush2.xpose.msra.mxu0 0.0
        %380 = vmatprep.subr.mxu0 0.0
        %381 = vmatpush2.xpose.msra.mxu0 0.0
        %382 = vmatprep.mubr.f32.mxu0 0.0
        %v383 = vand.u32 %v252, 4294901760
        %v384 = vsub.f32 %v252, %v383
        %v385 = vand.u32 %v384, 4294901760
        %v386 = vsub.f32 %v384, %v385
        %v387 = vand.u32 %v386, 4294901760
        %388 = vmatmul.mubr.f32.gmra.mxu0 %v387
        %v389 = vpop.f32.mrf.mxu0
        %v390 = vadd.f32 0.0, %v389
        %v391 = vpop.f32.mrf.mxu0
        %392 = vdwg.mxu0
        %393 = vmatprep.subr.mxu0 0.0
        %v394 = vand.u32 %v300, 4294901760
        %v395 = vsub.f32 %v300, %v394
        %v396 = vand.u32 %v395, 4294901760
        %v397 = vsub.f32 %v395, %v396
        %v398 = vand.u32 %v397, 4294901760
        %399 = vmatpush1.xpose.msra.mxu0 %v398
        %400 = vmatprep.subr.mxu0 0.0
        %v401 = vand.u32 %v297, 4294901760
        %v402 = vsub.f32 %v297, %v401
        %v403 = vand.u32 %v402, 4294901760
        %v404 = vsub.f32 %v402, %v403
        %v405 = vand.u32 %v404, 4294901760
        %406 = vmatpush1.xpose.msra.mxu0 %v405
        %407 = vmatprep.subr.mxu0 0.0
        %v408 = vand.u32 %v294, 4294901760
        %v409 = vsub.f32 %v294, %v408
        %v410 = vand.u32 %v409, 4294901760
        %v411 = vsub.f32 %v409, %v410
        %v412 = vand.u32 %v411, 4294901760
        %413 = vmatpush1.xpose.msra.mxu0 %v412
        %414 = vmatprep.subr.mxu0 0.0
        %v415 = vand.u32 %v291, 4294901760
        %v416 = vsub.f32 %v291, %v415
        %v417 = vand.u32 %v416, 4294901760
        %v418 = vsub.f32 %v416, %v417
        %v419 = vand.u32 %v418, 4294901760
        %420 = vmatpush1.xpose.msra.mxu0 %v419
        %421 = vmatprep.subr.mxu0 0.0
        %v422 = vand.u32 %v288, 4294901760
        %v423 = vsub.f32 %v288, %v422
        %v424 = vand.u32 %v423, 4294901760
        %v425 = vsub.f32 %v423, %v424
        %v426 = vand.u32 %v425, 4294901760
        %427 = vmatpush1.xpose.msra.mxu0 %v426
        %428 = vmatprep.subr.mxu0 0.0
        %v429 = vand.u32 %v285, 4294901760
        %v430 = vsub.f32 %v285, %v429
        %v431 = vand.u32 %v430, 4294901760
        %v432 = vsub.f32 %v430, %v431
        %v433 = vand.u32 %v432, 4294901760
        %434 = vmatpush1.xpose.msra.mxu0 %v433
        %435 = vmatprep.subr.mxu0 0.0
        %v436 = vand.u32 %v282, 4294901760
        %v437 = vsub.f32 %v282, %v436
        %v438 = vand.u32 %v437, 4294901760
        %v439 = vsub.f32 %v437, %v438
        %v440 = vand.u32 %v439, 4294901760
        %441 = vmatpush1.xpose.msra.mxu0 %v440
        %442 = vmatprep.subr.mxu0 0.0
        %v443 = vand.u32 %v279, 4294901760
        %v444 = vsub.f32 %v279, %v443
        %v445 = vand.u32 %v444, 4294901760
        %v446 = vsub.f32 %v444, %v445
        %v447 = vand.u32 %v446, 4294901760
        %448 = vmatpush1.xpose.msra.mxu0 %v447
        %449 = vmatprep.subr.mxu0 0.0
        %v450 = vand.u32 %v276, 4294901760
        %v451 = vsub.f32 %v276, %v450
        %v452 = vand.u32 %v451, 4294901760
        %v453 = vsub.f32 %v451, %v452
        %v454 = vand.u32 %v453, 4294901760
        %455 = vmatpush1.xpose.msra.mxu0 %v454
        %456 = vmatprep.subr.mxu0 0.0
        %v457 = vand.u32 %v273, 4294901760
        %v458 = vsub.f32 %v273, %v457
        %v459 = vand.u32 %v458, 4294901760
        %v460 = vsub.f32 %v458, %v459
        %v461 = vand.u32 %v460, 4294901760
        %462 = vmatpush1.xpose.msra.mxu0 %v461
        %463 = vmatprep.subr.mxu0 0.0
        %v464 = vand.u32 %v270, 4294901760
        %v465 = vsub.f32 %v270, %v464
        %v466 = vand.u32 %v465, 4294901760
        %v467 = vsub.f32 %v465, %v466
        %v468 = vand.u32 %v467, 4294901760
        %469 = vmatpush1.xpose.msra.mxu0 %v468
        %470 = vmatprep.subr.mxu0 0.0
        %v471 = vand.u32 %v267, 4294901760
        %v472 = vsub.f32 %v267, %v471
        %v473 = vand.u32 %v472, 4294901760
        %v474 = vsub.f32 %v472, %v473
        %v475 = vand.u32 %v474, 4294901760
        %476 = vmatpush1.xpose.msra.mxu0 %v475
        %477 = vmatprep.subr.mxu0 0.0
        %v478 = vand.u32 %v264, 4294901760
        %v479 = vsub.f32 %v264, %v478
        %v480 = vand.u32 %v479, 4294901760
        %v481 = vsub.f32 %v479, %v480
        %v482 = vand.u32 %v481, 4294901760
        %483 = vmatpush1.xpose.msra.mxu0 %v482
        %484 = vmatprep.subr.mxu0 0.0
        %v485 = vand.u32 %v261, 4294901760
        %v486 = vsub.f32 %v261, %v485
        %v487 = vand.u32 %v486, 4294901760
        %v488 = vsub.f32 %v486, %v487
        %v489 = vand.u32 %v488, 4294901760
        %490 = vmatpush1.xpose.msra.mxu0 %v489
        %491 = vmatprep.subr.mxu0 0.0
        %v492 = vand.u32 %v258, 4294901760
        %v493 = vsub.f32 %v258, %v492
        %v494 = vand.u32 %v493, 4294901760
        %v495 = vsub.f32 %v493, %v494
        %v496 = vand.u32 %v495, 4294901760
        %497 = vmatpush1.xpose.msra.mxu0 %v496
        %498 = vmatprep.subr.mxu0 0.0
        %v499 = vand.u32 %v255, 4294901760
        %v500 = vsub.f32 %v255, %v499
        %v501 = vand.u32 %v500, 4294901760
        %v502 = vsub.f32 %v500, %v501
        %v503 = vand.u32 %v502, 4294901760
        %504 = vmatpush1.xpose.msra.mxu0 %v503
        %505 = vmatprep.subr.mxu0 0.0
        %506 = vmatpush2.xpose.msra.mxu0 0.0
        %507 = vmatprep.subr.mxu0 0.0
        %508 = vmatpush2.xpose.msra.mxu0 0.0
        %509 = vmatprep.subr.mxu0 0.0
        %510 = vmatpush2.xpose.msra.mxu0 0.0
        %511 = vmatprep.subr.mxu0 0.0
        %512 = vmatpush2.xpose.msra.mxu0 0.0
        %513 = vmatprep.subr.mxu0 0.0
        %514 = vmatpush2.xpose.msra.mxu0 0.0
        %515 = vmatprep.subr.mxu0 0.0
        %516 = vmatpush2.xpose.msra.mxu0 0.0
        %517 = vmatprep.subr.mxu0 0.0
        %518 = vmatpush2.xpose.msra.mxu0 0.0
        %519 = vmatprep.subr.mxu0 0.0
        %520 = vmatpush2.xpose.msra.mxu0 0.0
        %521 = vmatprep.subr.mxu0 0.0
        %522 = vmatpush2.xpose.msra.mxu0 0.0
        %523 = vmatprep.subr.mxu0 0.0
        %524 = vmatpush2.xpose.msra.mxu0 0.0
        %525 = vmatprep.subr.mxu0 0.0
        %526 = vmatpush2.xpose.msra.mxu0 0.0
        %527 = vmatprep.subr.mxu0 0.0
        %528 = vmatpush2.xpose.msra.mxu0 0.0
        %529 = vmatprep.subr.mxu0 0.0
        %530 = vmatpush2.xpose.msra.mxu0 0.0
        %531 = vmatprep.subr.mxu0 0.0
        %532 = vmatpush2.xpose.msra.mxu0 0.0
        %533 = vmatprep.subr.mxu0 0.0
        %534 = vmatpush2.xpose.msra.mxu0 0.0
        %535 = vmatprep.subr.mxu0 0.0
        %536 = vmatpush2.xpose.msra.mxu0 0.0
        %537 = vmatprep.mubr.f32.mxu0 0.0
        %v538 = vand.u32 %v252, 4294901760
        %539 = vmatmul.mubr.f32.gmra.mxu0 %v538
        %v540 = vpop.f32.mrf.mxu0
        %v541 = vadd.f32 %v390, %v540
        %v542 = vpop.f32.mrf.mxu0
        %543 = vdwg.mxu0
        %544 = vmatprep.subr.mxu0 0.0
        %v545 = vand.u32 %v300, 4294901760
        %v546 = vsub.f32 %v300, %v545
        %547 = vmatpush1.xpose.msra.mxu0 %v546
        %548 = vmatprep.subr.mxu0 0.0
        %v549 = vand.u32 %v297, 4294901760
        %v550 = vsub.f32 %v297, %v549
        %551 = vmatpush1.xpose.msra.mxu0 %v550
        %552 = vmatprep.subr.mxu0 0.0
        %v553 = vand.u32 %v294, 4294901760
        %v554 = vsub.f32 %v294, %v553
        %555 = vmatpush1.xpose.msra.mxu0 %v554
        %556 = vmatprep.subr.mxu0 0.0
        %v557 = vand.u32 %v291, 4294901760
        %v558 = vsub.f32 %v291, %v557
        %559 = vmatpush1.xpose.msra.mxu0 %v558
        %560 = vmatprep.subr.mxu0 0.0
        %v561 = vand.u32 %v288, 4294901760
        %v562 = vsub.f32 %v288, %v561
        %563 = vmatpush1.xpose.msra.mxu0 %v562
        %564 = vmatprep.subr.mxu0 0.0
        %v565 = vand.u32 %v285, 4294901760
        %v566 = vsub.f32 %v285, %v565
        %567 = vmatpush1.xpose.msra.mxu0 %v566
        %568 = vmatprep.subr.mxu0 0.0
        %v569 = vand.u32 %v282, 4294901760
        %v570 = vsub.f32 %v282, %v569
        %571 = vmatpush1.xpose.msra.mxu0 %v570
        %572 = vmatprep.subr.mxu0 0.0
        %v573 = vand.u32 %v279, 4294901760
        %v574 = vsub.f32 %v279, %v573
        %575 = vmatpush1.xpose.msra.mxu0 %v574
        %576 = vmatprep.subr.mxu0 0.0
        %v577 = vand.u32 %v276, 4294901760
        %v578 = vsub.f32 %v276, %v577
        %579 = vmatpush1.xpose.msra.mxu0 %v578
        %580 = vmatprep.subr.mxu0 0.0
        %v581 = vand.u32 %v273, 4294901760
        %v582 = vsub.f32 %v273, %v581
        %583 = vmatpush1.xpose.msra.mxu0 %v582
        %584 = vmatprep.subr.mxu0 0.0
        %v585 = vand.u32 %v270, 4294901760
        %v586 = vsub.f32 %v270, %v585
        %587 = vmatpush1.xpose.msra.mxu0 %v586
        %588 = vmatprep.subr.mxu0 0.0
        %v589 = vand.u32 %v267, 4294901760
        %v590 = vsub.f32 %v267, %v589
        %591 = vmatpush1.xpose.msra.mxu0 %v590
        %592 = vmatprep.subr.mxu0 0.0
        %v593 = vand.u32 %v264, 4294901760
        %v594 = vsub.f32 %v264, %v593
        %595 = vmatpush1.xpose.msra.mxu0 %v594
        %596 = vmatprep.subr.mxu0 0.0
        %v597 = vand.u32 %v261, 4294901760
        %v598 = vsub.f32 %v261, %v597
        %599 = vmatpush1.xpose.msra.mxu0 %v598
        %600 = vmatprep.subr.mxu0 0.0
        %v601 = vand.u32 %v258, 4294901760
        %v602 = vsub.f32 %v258, %v601
        %603 = vmatpush1.xpose.msra.mxu0 %v602
        %604 = vmatprep.subr.mxu0 0.0
        %v605 = vand.u32 %v255, 4294901760
        %v606 = vsub.f32 %v255, %v605
        %607 = vmatpush1.xpose.msra.mxu0 %v606
        %608 = vmatprep.subr.mxu0 0.0
        %609 = vmatpush2.xpose.msra.mxu0 0.0
        %610 = vmatprep.subr.mxu0 0.0
        %611 = vmatpush2.xpose.msra.mxu0 0.0
        %612 = vmatprep.subr.mxu0 0.0
        %613 = vmatpush2.xpose.msra.mxu0 0.0
        %614 = vmatprep.subr.mxu0 0.0
        %615 = vmatpush2.xpose.msra.mxu0 0.0
        %616 = vmatprep.subr.mxu0 0.0
        %617 = vmatpush2.xpose.msra.mxu0 0.0
        %618 = vmatprep.subr.mxu0 0.0
        %619 = vmatpush2.xpose.msra.mxu0 0.0
        %620 = vmatprep.subr.mxu0 0.0
        %621 = vmatpush2.xpose.msra.mxu0 0.0
        %622 = vmatprep.subr.mxu0 0.0
        %623 = vmatpush2.xpose.msra.mxu0 0.0
        %624 = vmatprep.subr.mxu0 0.0
        %625 = vmatpush2.xpose.msra.mxu0 0.0
        %626 = vmatprep.subr.mxu0 0.0
        %627 = vmatpush2.xpose.msra.mxu0 0.0
        %628 = vmatprep.subr.mxu0 0.0
        %629 = vmatpush2.xpose.msra.mxu0 0.0
        %630 = vmatprep.subr.mxu0 0.0
        %631 = vmatpush2.xpose.msra.mxu0 0.0
        %632 = vmatprep.subr.mxu0 0.0
        %633 = vmatpush2.xpose.msra.mxu0 0.0
        %634 = vmatprep.subr.mxu0 0.0
        %635 = vmatpush2.xpose.msra.mxu0 0.0
        %636 = vmatprep.subr.mxu0 0.0
        %637 = vmatpush2.xpose.msra.mxu0 0.0
        %638 = vmatprep.subr.mxu0 0.0
        %639 = vmatpush2.xpose.msra.mxu0 0.0
        %640 = vmatprep.mubr.f32.mxu0 0.0
        %v641 = vand.u32 %v252, 4294901760
        %v642 = vsub.f32 %v252, %v641
        %643 = vmatmul.mubr.f32.gmra.mxu0 %v642
        %v644 = vpop.f32.mrf.mxu0
        %v645 = vadd.f32 %v541, %v644
        %v646 = vpop.f32.mrf.mxu0
        %647 = vdwg.mxu0
        %648 = vmatprep.subr.mxu0 0.0
        %v649 = vand.u32 %v300, 4294901760
        %650 = vmatpush1.xpose.msra.mxu0 %v649
        %651 = vmatprep.subr.mxu0 0.0
        %v652 = vand.u32 %v297, 4294901760
        %653 = vmatpush1.xpose.msra.mxu0 %v652
        %654 = vmatprep.subr.mxu0 0.0
        %v655 = vand.u32 %v294, 4294901760
        %656 = vmatpush1.xpose.msra.mxu0 %v655
        %657 = vmatprep.subr.mxu0 0.0
        %v658 = vand.u32 %v291, 4294901760
        %659 = vmatpush1.xpose.msra.mxu0 %v658
        %660 = vmatprep.subr.mxu0 0.0
        %v661 = vand.u32 %v288, 4294901760
        %662 = vmatpush1.xpose.msra.mxu0 %v661
        %663 = vmatprep.subr.mxu0 0.0
        %v664 = vand.u32 %v285, 4294901760
        %665 = vmatpush1.xpose.msra.mxu0 %v664
        %666 = vmatprep.subr.mxu0 0.0
        %v667 = vand.u32 %v282, 4294901760
        %668 = vmatpush1.xpose.msra.mxu0 %v667
        %669 = vmatprep.subr.mxu0 0.0
        %v670 = vand.u32 %v279, 4294901760
        %671 = vmatpush1.xpose.msra.mxu0 %v670
        %672 = vmatprep.subr.mxu0 0.0
        %v673 = vand.u32 %v276, 4294901760
        %674 = vmatpush1.xpose.msra.mxu0 %v673
        %675 = vmatprep.subr.mxu0 0.0
        %v676 = vand.u32 %v273, 4294901760
        %677 = vmatpush1.xpose.msra.mxu0 %v676
        %678 = vmatprep.subr.mxu0 0.0
        %v679 = vand.u32 %v270, 4294901760
        %680 = vmatpush1.xpose.msra.mxu0 %v679
        %681 = vmatprep.subr.mxu0 0.0
        %v682 = vand.u32 %v267, 4294901760
        %683 = vmatpush1.xpose.msra.mxu0 %v682
        %684 = vmatprep.subr.mxu0 0.0
        %v685 = vand.u32 %v264, 4294901760
        %686 = vmatpush1.xpose.msra.mxu0 %v685
        %687 = vmatprep.subr.mxu0 0.0
        %v688 = vand.u32 %v261, 4294901760
        %689 = vmatpush1.xpose.msra.mxu0 %v688
        %690 = vmatprep.subr.mxu0 0.0
        %v691 = vand.u32 %v258, 4294901760
        %692 = vmatpush1.xpose.msra.mxu0 %v691
        %693 = vmatprep.subr.mxu0 0.0
        %v694 = vand.u32 %v255, 4294901760
        %695 = vmatpush1.xpose.msra.mxu0 %v694
        %696 = vmatprep.subr.mxu0 0.0
        %697 = vmatpush2.xpose.msra.mxu0 0.0
        %698 = vmatprep.subr.mxu0 0.0
        %699 = vmatpush2.xpose.msra.mxu0 0.0
        %700 = vmatprep.subr.mxu0 0.0
        %701 = vmatpush2.xpose.msra.mxu0 0.0
        %702 = vmatprep.subr.mxu0 0.0
        %703 = vmatpush2.xpose.msra.mxu0 0.0
        %704 = vmatprep.subr.mxu0 0.0
        %705 = vmatpush2.xpose.msra.mxu0 0.0
        %706 = vmatprep.subr.mxu0 0.0
        %707 = vmatpush2.xpose.msra.mxu0 0.0
        %708 = vmatprep.subr.mxu0 0.0
        %709 = vmatpush2.xpose.msra.mxu0 0.0
        %710 = vmatprep.subr.mxu0 0.0
        %711 = vmatpush2.xpose.msra.mxu0 0.0
        %712 = vmatprep.subr.mxu0 0.0
        %713 = vmatpush2.xpose.msra.mxu0 0.0
        %714 = vmatprep.subr.mxu0 0.0
        %715 = vmatpush2.xpose.msra.mxu0 0.0
        %716 = vmatprep.subr.mxu0 0.0
        %717 = vmatpush2.xpose.msra.mxu0 0.0
        %718 = vmatprep.subr.mxu0 0.0
        %719 = vmatpush2.xpose.msra.mxu0 0.0
        %720 = vmatprep.subr.mxu0 0.0
        %721 = vmatpush2.xpose.msra.mxu0 0.0
        %722 = vmatprep.subr.mxu0 0.0
        %723 = vmatpush2.xpose.msra.mxu0 0.0
        %724 = vmatprep.subr.mxu0 0.0
        %725 = vmatpush2.xpose.msra.mxu0 0.0
        %726 = vmatprep.subr.mxu0 0.0
        %727 = vmatpush2.xpose.msra.mxu0 0.0
        %728 = vmatprep.mubr.f32.mxu0 0.0
        %v729 = vand.u32 %v252, 4294901760
        %v730 = vsub.f32 %v252, %v729
        %v731 = vand.u32 %v730, 4294901760
        %732 = vmatmul.mubr.f32.gmra.mxu0 %v731
        %v733 = vpop.f32.mrf.mxu0
        %v734 = vadd.f32 %v645, %v733
        %v735 = vpop.f32.mrf.mxu0
        %736 = vdwg.mxu0
        %737 = vmatprep.subr.mxu0 0.0
        %v738 = vand.u32 %v300, 4294901760
        %v739 = vsub.f32 %v300, %v738
        %v740 = vand.u32 %v739, 4294901760
        %741 = vmatpush1.xpose.msra.mxu0 %v740
        %742 = vmatprep.subr.mxu0 0.0
        %v743 = vand.u32 %v297, 4294901760
        %v744 = vsub.f32 %v297, %v743
        %v745 = vand.u32 %v744, 4294901760
        %746 = vmatpush1.xpose.msra.mxu0 %v745
        %747 = vmatprep.subr.mxu0 0.0
        %v748 = vand.u32 %v294, 4294901760
        %v749 = vsub.f32 %v294, %v748
        %v750 = vand.u32 %v749, 4294901760
        %751 = vmatpush1.xpose.msra.mxu0 %v750
        %752 = vmatprep.subr.mxu0 0.0
        %v753 = vand.u32 %v291, 4294901760
        %v754 = vsub.f32 %v291, %v753
        %v755 = vand.u32 %v754, 4294901760
        %756 = vmatpush1.xpose.msra.mxu0 %v755
        %757 = vmatprep.subr.mxu0 0.0
        %v758 = vand.u32 %v288, 4294901760
        %v759 = vsub.f32 %v288, %v758
        %v760 = vand.u32 %v759, 4294901760
        %761 = vmatpush1.xpose.msra.mxu0 %v760
        %762 = vmatprep.subr.mxu0 0.0
        %v763 = vand.u32 %v285, 4294901760
        %v764 = vsub.f32 %v285, %v763
        %v765 = vand.u32 %v764, 4294901760
        %766 = vmatpush1.xpose.msra.mxu0 %v765
        %767 = vmatprep.subr.mxu0 0.0
        %v768 = vand.u32 %v282, 4294901760
        %v769 = vsub.f32 %v282, %v768
        %v770 = vand.u32 %v769, 4294901760
        %771 = vmatpush1.xpose.msra.mxu0 %v770
        %772 = vmatprep.subr.mxu0 0.0
        %v773 = vand.u32 %v279, 4294901760
        %v774 = vsub.f32 %v279, %v773
        %v775 = vand.u32 %v774, 4294901760
        %776 = vmatpush1.xpose.msra.mxu0 %v775
        %777 = vmatprep.subr.mxu0 0.0
        %v778 = vand.u32 %v276, 4294901760
        %v779 = vsub.f32 %v276, %v778
        %v780 = vand.u32 %v779, 4294901760
        %781 = vmatpush1.xpose.msra.mxu0 %v780
        %782 = vmatprep.subr.mxu0 0.0
        %v783 = vand.u32 %v273, 4294901760
        %v784 = vsub.f32 %v273, %v783
        %v785 = vand.u32 %v784, 4294901760
        %786 = vmatpush1.xpose.msra.mxu0 %v785
        %787 = vmatprep.subr.mxu0 0.0
        %v788 = vand.u32 %v270, 4294901760
        %v789 = vsub.f32 %v270, %v788
        %v790 = vand.u32 %v789, 4294901760
        %791 = vmatpush1.xpose.msra.mxu0 %v790
        %792 = vmatprep.subr.mxu0 0.0
        %v793 = vand.u32 %v267, 4294901760
        %v794 = vsub.f32 %v267, %v793
        %v795 = vand.u32 %v794, 4294901760
        %796 = vmatpush1.xpose.msra.mxu0 %v795
        %797 = vmatprep.subr.mxu0 0.0
        %v798 = vand.u32 %v264, 4294901760
        %v799 = vsub.f32 %v264, %v798
        %v800 = vand.u32 %v799, 4294901760
        %801 = vmatpush1.xpose.msra.mxu0 %v800
        %802 = vmatprep.subr.mxu0 0.0
        %v803 = vand.u32 %v261, 4294901760
        %v804 = vsub.f32 %v261, %v803
        %v805 = vand.u32 %v804, 4294901760
        %806 = vmatpush1.xpose.msra.mxu0 %v805
        %807 = vmatprep.subr.mxu0 0.0
        %v808 = vand.u32 %v258, 4294901760
        %v809 = vsub.f32 %v258, %v808
        %v810 = vand.u32 %v809, 4294901760
        %811 = vmatpush1.xpose.msra.mxu0 %v810
        %812 = vmatprep.subr.mxu0 0.0
        %v813 = vand.u32 %v255, 4294901760
        %v814 = vsub.f32 %v255, %v813
        %v815 = vand.u32 %v814, 4294901760
        %816 = vmatpush1.xpose.msra.mxu0 %v815
        %817 = vmatprep.subr.mxu0 0.0
        %818 = vmatpush2.xpose.msra.mxu0 0.0
        %819 = vmatprep.subr.mxu0 0.0
        %820 = vmatpush2.xpose.msra.mxu0 0.0
        %821 = vmatprep.subr.mxu0 0.0
        %822 = vmatpush2.xpose.msra.mxu0 0.0
        %823 = vmatprep.subr.mxu0 0.0
        %824 = vmatpush2.xpose.msra.mxu0 0.0
        %825 = vmatprep.subr.mxu0 0.0
        %826 = vmatpush2.xpose.msra.mxu0 0.0
        %827 = vmatprep.subr.mxu0 0.0
        %828 = vmatpush2.xpose.msra.mxu0 0.0
        %829 = vmatprep.subr.mxu0 0.0
        %830 = vmatpush2.xpose.msra.mxu0 0.0
        %831 = vmatprep.subr.mxu0 0.0
        %832 = vmatpush2.xpose.msra.mxu0 0.0
        %833 = vmatprep.subr.mxu0 0.0
        %834 = vmatpush2.xpose.msra.mxu0 0.0
        %835 = vmatprep.subr.mxu0 0.0
        %836 = vmatpush2.xpose.msra.mxu0 0.0
        %837 = vmatprep.subr.mxu0 0.0
        %838 = vmatpush2.xpose.msra.mxu0 0.0
        %839 = vmatprep.subr.mxu0 0.0
        %840 = vmatpush2.xpose.msra.mxu0 0.0
        %841 = vmatprep.subr.mxu0 0.0
        %842 = vmatpush2.xpose.msra.mxu0 0.0
        %843 = vmatprep.subr.mxu0 0.0
        %844 = vmatpush2.xpose.msra.mxu0 0.0
        %845 = vmatprep.subr.mxu0 0.0
        %846 = vmatpush2.xpose.msra.mxu0 0.0
        %847 = vmatprep.subr.mxu0 0.0
        %848 = vmatpush2.xpose.msra.mxu0 0.0
        %849 = vmatprep.mubr.f32.mxu0 0.0
        %v850 = vand.u32 %v252, 4294901760
        %851 = vmatmul.mubr.f32.gmra.mxu0 %v850
        %v852 = vpop.f32.mrf.mxu0
        %v853 = vadd.f32 %v734, %v852
        %v854 = vpop.f32.mrf.mxu0
        %855 = vdwg.mxu0
        %856 = vmatprep.subr.mxu0 0.0
        %v857 = vand.u32 %v300, 4294901760
        %858 = vmatpush1.xpose.msra.mxu0 %v857
        %859 = vmatprep.subr.mxu0 0.0
        %v860 = vand.u32 %v297, 4294901760
        %861 = vmatpush1.xpose.msra.mxu0 %v860
        %862 = vmatprep.subr.mxu0 0.0
        %v863 = vand.u32 %v294, 4294901760
        %864 = vmatpush1.xpose.msra.mxu0 %v863
        %865 = vmatprep.subr.mxu0 0.0
        %v866 = vand.u32 %v291, 4294901760
        %867 = vmatpush1.xpose.msra.mxu0 %v866
        %868 = vmatprep.subr.mxu0 0.0
        %v869 = vand.u32 %v288, 4294901760
        %870 = vmatpush1.xpose.msra.mxu0 %v869
        %871 = vmatprep.subr.mxu0 0.0
        %v872 = vand.u32 %v285, 4294901760
        %873 = vmatpush1.xpose.msra.mxu0 %v872
        %874 = vmatprep.subr.mxu0 0.0
        %v875 = vand.u32 %v282, 4294901760
        %876 = vmatpush1.xpose.msra.mxu0 %v875
        %877 = vmatprep.subr.mxu0 0.0
        %v878 = vand.u32 %v279, 4294901760
        %879 = vmatpush1.xpose.msra.mxu0 %v878
        %880 = vmatprep.subr.mxu0 0.0
        %v881 = vand.u32 %v276, 4294901760
        %882 = vmatpush1.xpose.msra.mxu0 %v881
        %883 = vmatprep.subr.mxu0 0.0
        %v884 = vand.u32 %v273, 4294901760
        %885 = vmatpush1.xpose.msra.mxu0 %v884
        %886 = vmatprep.subr.mxu0 0.0
        %v887 = vand.u32 %v270, 4294901760
        %888 = vmatpush1.xpose.msra.mxu0 %v887
        %889 = vmatprep.subr.mxu0 0.0
        %v890 = vand.u32 %v267, 4294901760
        %891 = vmatpush1.xpose.msra.mxu0 %v890
        %892 = vmatprep.subr.mxu0 0.0
        %v893 = vand.u32 %v264, 4294901760
        %894 = vmatpush1.xpose.msra.mxu0 %v893
        %895 = vmatprep.subr.mxu0 0.0
        %v896 = vand.u32 %v261, 4294901760
        %897 = vmatpush1.xpose.msra.mxu0 %v896
        %898 = vmatprep.subr.mxu0 0.0
        %v899 = vand.u32 %v258, 4294901760
        %900 = vmatpush1.xpose.msra.mxu0 %v899
        %901 = vmatprep.subr.mxu0 0.0
        %v902 = vand.u32 %v255, 4294901760
        %903 = vmatpush1.xpose.msra.mxu0 %v902
        %904 = vmatprep.subr.mxu0 0.0
        %905 = vmatpush2.xpose.msra.mxu0 0.0
        %906 = vmatprep.subr.mxu0 0.0
        %907 = vmatpush2.xpose.msra.mxu0 0.0
        %908 = vmatprep.subr.mxu0 0.0
        %909 = vmatpush2.xpose.msra.mxu0 0.0
        %910 = vmatprep.subr.mxu0 0.0
        %911 = vmatpush2.xpose.msra.mxu0 0.0
        %912 = vmatprep.subr.mxu0 0.0
        %913 = vmatpush2.xpose.msra.mxu0 0.0
        %914 = vmatprep.subr.mxu0 0.0
        %915 = vmatpush2.xpose.msra.mxu0 0.0
        %916 = vmatprep.subr.mxu0 0.0
        %917 = vmatpush2.xpose.msra.mxu0 0.0
        %918 = vmatprep.subr.mxu0 0.0
        %919 = vmatpush2.xpose.msra.mxu0 0.0
        %920 = vmatprep.subr.mxu0 0.0
        %921 = vmatpush2.xpose.msra.mxu0 0.0
        %922 = vmatprep.subr.mxu0 0.0
        %923 = vmatpush2.xpose.msra.mxu0 0.0
        %924 = vmatprep.subr.mxu0 0.0
        %925 = vmatpush2.xpose.msra.mxu0 0.0
        %926 = vmatprep.subr.mxu0 0.0
        %927 = vmatpush2.xpose.msra.mxu0 0.0
        %928 = vmatprep.subr.mxu0 0.0
        %929 = vmatpush2.xpose.msra.mxu0 0.0
        %930 = vmatprep.subr.mxu0 0.0
        %931 = vmatpush2.xpose.msra.mxu0 0.0
        %932 = vmatprep.subr.mxu0 0.0
        %933 = vmatpush2.xpose.msra.mxu0 0.0
        %934 = vmatprep.subr.mxu0 0.0
        %935 = vmatpush2.xpose.msra.mxu0 0.0
        %936 = vmatprep.mubr.f32.mxu0 0.0
        %v937 = vand.u32 %v252, 4294901760
        %938 = vmatmul.mubr.f32.gmra.mxu0 %v937
        %v939 = vpop.f32.mrf.mxu0
        %v940 = vadd.f32 %v853, %v939
        %v941 = vpop.f32.mrf.mxu0
        %942 = vdwg.mxu0
        %v943 = vld [vmem:[%s232] sm:$0xff]
        %v944 = vsub.f32 1.0, %v943
        %v945 = vmul.f32 %v940, %v944
        %v946 = vmul.f32 %v943, 1e+08
        %v947 = vsub.f32 %v945, %v946
        %948 = vst [vmem:[%s214] sm:$0xff] %v947
        %s949 = sand.u32 %s119, 1
        %s950 = scalar_lea.sflag [#allocation3], %s949
        %s951 = sand.u32 %s119, 1
        %s952 = smul.addr %s951, 8
        %s953 = scalar_lea.vmem [#allocation2], %s952
        // Predicated region
        $region33: #{tpu_custom_call.1} parent=31 // pred_check
          %p954 = pneg %p129
        $region34: #{tpu_custom_call.1} parent=31 // pred_check_branch
          %956 = sbr.rel (%p954) target = $region36
        $region35: #{tpu_custom_call.1} parent=31 // pred_region
          %s958 = ssub.s32 128, 128
          %959 = vsyncadd %s950, %s958
          %s960 = smul.addr %s21, 2
          %s961 = sadd.s32 %s22, %s960
          %s962 = smul.addr %s961, 128
          %s963 = scalar_lea.hbm %s3, %s962
          %s965 = sshll.u32 %s953, 4
          %s966 = int_to_ptr.vmem [resolvable:$true] %s965
          %968 = dma.vmem_to_hbm [thread:$0]  %s966, 128, %s963, %s950
        $region36: #{tpu_custom_call.1} parent=31 // pred_fallthru
          _
      $region32: #{tpu_custom_call.1} parent=5 // pred_fallthru
        _
      %p969 = scmp.le.s32.totalorder 2, %s12
      // Predicated region
      $region37: #{tpu_custom_call.1} parent=5 // pred_check
        %p970 = pneg %p969
      $region38: #{tpu_custom_call.1} parent=5 // pred_check_branch
        %972 = sbr.rel (%p970) target = $region40
      $region39: #{tpu_custom_call.1} parent=5 // pred_region
        %s973 = ssub.s32 %s12, 2
        // Predicated region
        $region41: #{tpu_custom_call.1} parent=39 // pred_check
          %p974 = pneg %p135
        $region42: #{tpu_custom_call.1} parent=39 // pred_check_branch
          %976 = sbr.rel (%p974) target = $region44
        $region43: #{tpu_custom_call.1} parent=39 // pred_region
          %s977 = sand.u32 %s120, 1
          %s978 = scalar_lea.sflag [#allocation3], %s977
          %s979 = sand.u32 %s120, 1
          %s980 = smul.addr %s979, 8
          %s981 = scalar_lea.vmem [#allocation2], %s980
          %982 = dma.done %s978, 128
        $region44: #{tpu_custom_call.1} parent=39 // pred_fallthru
          _
      $region40: #{tpu_custom_call.1} parent=5 // pred_fallthru
        _
    $region6: #{tpu_custom_call.1} parent=1 // loop_footer
      %s16 = sadd.s32 1, %s12
    $region7: #{tpu_custom_call.1} parent=1 // loop_footer_branch
      %11 = sbr.rel target = $region3
    $region8: #{tpu_custom_call.1} parent=1 // loop_exit
      _
    %983 = vsyncpa [#allocation3], 1
    %s984 = scalar_lea.sflag [#allocation3], 1
    %985 = vsyncpa %s984, 1

</llo_original>
